<compile_context>
chip_gen: v7x
topology: tpu7x:2x2x1
jax: 0.10.0
libtpu: 0.0.40
codegen_flags: <defaults>
</compile_context>

<pallas_src>
import functools

import jax
import jax.numpy as jnp
from jax.experimental import pallas as pl
from jax.experimental.pallas import tpu as pltpu

LANE = 128      # lane width (last-dim tiling unit)
SUBLANE = 8     # f32 sublane width (second-to-last dim tiling unit)


def _round_up(x, m):
    return (x + m - 1) // m * m


def _pad2(x, rows, cols):
    return jnp.pad(x, ((0, rows - x.shape[0]), (0, cols - x.shape[1])))


def _decoder3_kernel(Hp, H2p, H3p, Dp,
                     z_ref, w1_ref, w2_ref, w3_ref, w4_ref, bias_ref, mu_ref):
    """One batch tile through all four layers.  bf16 matmuls, f32 accumulate."""
    # Static, lane-aligned slices of the concatenated f32 bias vector.
    b1 = bias_ref[:, 0:Hp]
    b2 = bias_ref[:, Hp:Hp + H2p]
    b3 = bias_ref[:, Hp + H2p:Hp + H2p + H3p]
    b4 = bias_ref[:, Hp + H2p + H3p:Hp + H2p + H3p + Dp]

    # Layer 1: (TB, Mp)bf16 @ (Mp, Hp)bf16 -> f32, bias + ReLU in f32.
    h = jnp.dot(z_ref[...], w1_ref[...], preferred_element_type=jnp.float32)
    h = jnp.maximum(h + b1, 0.0).astype(jnp.bfloat16)
    # Layer 2
    h = jnp.dot(h, w2_ref[...], preferred_element_type=jnp.float32)
    h = jnp.maximum(h + b2, 0.0).astype(jnp.bfloat16)
    # Layer 3
    h = jnp.dot(h, w3_ref[...], preferred_element_type=jnp.float32)
    h = jnp.maximum(h + b3, 0.0).astype(jnp.bfloat16)
    # Layer 4 (mu head): lane-dense (TB, Dp) f32 output slab.
    mu = jnp.dot(h, w4_ref[...], preferred_element_type=jnp.float32) + b4
    mu_ref[...] = mu.astype(mu_ref.dtype)


def prepare_decoder3_params(params):
    """One-time prep: lane-pad, cast weights to bf16, concatenate biases.

    Zero-padding keeps the math exact: padded input columns are zero, padded
    weight rows/cols and biases are zero, so padded activations stay exactly
    zero through bias-add and ReLU and contribute nothing downstream.
    """
    M, H = params["w1"].shape
    D = params["w4"].shape[1]
    H2, H3 = 2 * H, 3 * H
    Mp, Hp, H2p, H3p, Dp = (_round_up(d, LANE) for d in (M, H, H2, H3, D))

    prepared = {
        "w1": _pad2(params["w1"], Mp, Hp).astype(jnp.bfloat16),
        "w2": _pad2(params["w2"], Hp, H2p).astype(jnp.bfloat16),
        "w3": _pad2(params["w3"], H2p, H3p).astype(jnp.bfloat16),
        "w4": _pad2(params["w4"], H3p, Dp).astype(jnp.bfloat16),
        # Single concatenated f32 bias row -> one DMA instead of four.
        "bias": jnp.concatenate(
            [_pad2(params["b1"].reshape(1, -1), 1, Hp),
             _pad2(params["b2"].reshape(1, -1), 1, H2p),
             _pad2(params["b3"].reshape(1, -1), 1, H3p),
             _pad2(params["b4"].reshape(1, -1), 1, Dp)],
            axis=1).astype(jnp.float32),
        "log_scale": params["log_scale"].astype(jnp.float32),
    }
    return prepared, (M, H, D)


@functools.partial(jax.jit, static_argnames=("dims", "tile_b"))
def decoder3_forward(Z, prepared, *, dims, tile_b=None):
    """Z: [B, M] float32.  prepared/dims: from prepare_decoder3_params."""
    M, H, D = dims
    B = Z.shape[0]
    H2, H3 = 2 * H, 3 * H
    Mp, Hp, H2p, H3p, Dp = (_round_up(d, LANE) for d in (M, H, H2, H3, D))

    # --- Batch tile selection (per-target MXU geometry) -------------------
    kind = jax.devices()[0].device_kind.lower()
    if tile_b is None:
        # v5e MXU is 4x128^2 -> 128 rows already native; v6e/v7x are 2x256^2.
        tile_b = 128 if "v5" in kind else 256
    Bp8 = _round_up(B, SUBLANE)
    tb = _round_up(min(tile_b, Bp8), SUBLANE)
    if ("v7" in kind or "tpu7" in kind) and Bp8 > SUBLANE:
        # v7x has 2 TensorCores: make sure the "parallel" batch axis has >= 2
        # grid steps (when B is big enough to split) so both cores are used.
        tb = min(tb, _round_up(pl.cdiv(Bp8, 2), SUBLANE))
    Bp = _round_up(B, tb)
    n_b = Bp // tb

    # Only Z changes per call: pad + cast it here (weights are pre-padded).
    z_p = _pad2(Z, Bp, Mp).astype(jnp.bfloat16)

    def const(shape):
        # Weight-stationary: same block every grid step -> DMA'd once; single
        # pipeline buffer (no second copy) since the block never changes.
        return pl.BlockSpec(shape, lambda i: (0, 0), pipeline_mode=pl.Buffered(1))

    # Cost estimate from TRUE dims (advisory for XLA scheduling).
    true_flops = 2 * B * (M * H + H * H2 + H2 * H3 + H3 * D)
    true_bytes = (2 * B * M + 4 * B * D                        # Z in, mu out
                  + 2 * (M * H + H * H2 + H2 * H3 + H3 * D)    # bf16 weights
                  + 4 * (H + H2 + H3 + D))                     # f32 biases

    # Rough VMEM footprint: single-buffered bf16 weights + f32 bias,
    # double-buffered Z/mu tiles, live f32+bf16 activations.
    vmem_est = (2 * (Mp * Hp + Hp * H2p + H2p * H3p + H3p * Dp)
                + 4 * (Hp + H2p + H3p + Dp)
                + 2 * (2 * tb * Mp) + 2 * (4 * tb * Dp)
                + 6 * tb * max(Hp, H2p, H3p))
    vmem_limit = None
    if vmem_est > 12 * 1024 * 1024:   # approaching v5e's 16 MiB scoped default
        vmem_limit = int(min(max(2 * vmem_est, 32 * 1024 * 1024),
                             64 * 1024 * 1024))   # stays valid on v7x (64 MiB)
    # TODO(synk): for very large H (padded bf16 weights nearing ~32 MiB, half of
    # v7x's 64 MiB VMEM), switch to a K-tiled "arbitrary" grid axis with an f32
    # accumulator scratch instead of keeping all four weights VMEM-resident.

    kernel = functools.partial(_decoder3_kernel, Hp, H2p, H3p, Dp)

    mu_p = pl.pallas_call(
        kernel,
        out_shape=jax.ShapeDtypeStruct((Bp, Dp), jnp.float32),
        grid_spec=pltpu.PrefetchScalarGridSpec(
            num_scalar_prefetch=0,
            grid=(n_b,),
            in_specs=[
                pl.BlockSpec((tb, Mp), lambda i: (i, 0)),   # Z tile (pipelined)
                const((Mp, Hp)),
                const((Hp, H2p)),
                const((H2p, H3p)),
                const((H3p, Dp)),
                const((1, Hp + H2p + H3p + Dp)),            # concat biases
            ],
            out_specs=pl.BlockSpec((tb, Dp), lambda i: (i, 0)),
        ),
        compiler_params=pltpu.CompilerParams(
            dimension_semantics=("parallel",),   # megacore sharding on v7x
            vmem_limit_bytes=vmem_limit,
        ),
        cost_estimate=pl.CostEstimate(
            flops=true_flops, transcendentals=0, bytes_accessed=true_bytes),
    )(z_p, prepared["w1"], prepared["w2"], prepared["w3"], prepared["w4"],
      prepared["bias"])

    mu = mu_p[:B, :D]
    # std = exp(log_scale) is parameter-only math; keep it out of the kernel.
    std = jnp.exp(prepared["log_scale"])
    return mu, std


def init_decoder3_params(key, M, H, D):
    """Deterministic init matching nn.Linear shapes; weights stored as (in, out)."""
    ks = jax.random.split(key, 8)

    def linear(kw, kb, fan_in, fan_out):
        bound = 1.0 / jnp.sqrt(fan_in)
        # PyTorch Linear stores (out, in); we store transposed (in, out).
        w = jax.random.uniform(kw, (fan_in, fan_out), jnp.float32, -bound, bound)
        b = jax.random.uniform(kb, (fan_out,), jnp.float32, -bound, bound)
        return w, b

    w1, b1 = linear(ks[0], ks[1], M, H)
    w2, b2 = linear(ks[2], ks[3], H, H * 2)
    w3, b3 = linear(ks[4], ks[5], H * 2, H * 3)
    w4, b4 = linear(ks[6], ks[7], H * 3, D)
    return {
        "w1": w1, "b1": b1,
        "w2": w2, "b2": b2,
        "w3": w3, "b3": b3,
        "w4": w4, "b4": b4,
        "log_scale": jnp.zeros((1,), jnp.float32),
    }


def decoder3_ref(Z, p):
    """Plain-JAX f32 reference of the PyTorch forward (sanity check)."""
    h = jnp.maximum(Z @ p["w1"] + p["b1"], 0.0)
    h = jnp.maximum(h @ p["w2"] + p["b2"], 0.0)
    h = jnp.maximum(h @ p["w3"] + p["b3"], 0.0)
    mu = h @ p["w4"] + p["b4"]
    return mu, jnp.exp(p["log_scale"])


if __name__ == "__main__":
    # Small shapes consistent with the module: latent M=16, hidden H=32, out D=16.
    B, M, H, D = 8, 16, 32, 16

    key = jax.random.PRNGKey(0)
    k_params, k_z = jax.random.split(key)
    params = init_decoder3_params(k_params, M, H, D)
    Z = jax.random.normal(k_z, (B, M), jnp.float32)

    prepared, dims = prepare_decoder3_params(params)   # one-time prep
    mu, std = decoder3_forward(Z, prepared, dims=dims)
    mu = jax.block_until_ready(mu)
    std = jax.block_until_ready(std)

    mu_ref, std_ref = decoder3_ref(Z, params)
    assert mu.shape == (B, D) and std.shape == (1,)
    # bf16 weights/activations with f32 accumulation vs an f32 reference:
    # expect ~1e-2-level relative error, so the tolerance is loosened.
    assert jnp.allclose(mu, mu_ref, atol=5e-2, rtol=5e-2), float(
        jnp.max(jnp.abs(mu - mu_ref)))
    assert jnp.allclose(std, std_ref, atol=1e-6)

    print("KERNEL_OK")
</pallas_src>

<mosaic_0001>
module attributes {stable_mosaic.version = 11 : i64} {
  func.func @_decoder3_kernel(%arg0: i32, %arg1: memref<8x128xbf16, #tpu.memory_space<vmem>>, %arg2: memref<128x128xbf16, #tpu.memory_space<vmem>>, %arg3: memref<128x128xbf16, #tpu.memory_space<vmem>>, %arg4: memref<128x128xbf16, #tpu.memory_space<vmem>>, %arg5: memref<128x128xbf16, #tpu.memory_space<vmem>>, %arg6: memref<1x512xf32, #tpu.memory_space<vmem>>, %arg7: memref<8x128xf32, #tpu.memory_space<vmem>>) attributes {dimension_semantics = [#tpu.dimension_semantics<parallel>], iteration_bounds = array<i64: 1>, scalar_prefetch = 0 : i64, scratch_operands = 0 : i64, tpu.core_type = #tpu.core_type<tc>, window_params = [{transform_indices = @transform_0, window_bounds = array<i64: 8, 128>}, {pipeline_mode = #tpu.pipeline_mode<synchronous>, transform_indices = @transform_1, window_bounds = array<i64: 128, 128>}, {pipeline_mode = #tpu.pipeline_mode<synchronous>, transform_indices = @transform_2, window_bounds = array<i64: 128, 128>}, {pipeline_mode = #tpu.pipeline_mode<synchronous>, transform_indices = @transform_3, window_bounds = array<i64: 128, 128>}, {pipeline_mode = #tpu.pipeline_mode<synchronous>, transform_indices = @transform_4, window_bounds = array<i64: 128, 128>}, {pipeline_mode = #tpu.pipeline_mode<synchronous>, transform_indices = @transform_5, window_bounds = array<i64: 1, 512>}, {transform_indices = @transform_6, window_bounds = array<i64: 8, 128>}]} {
    %c0 = arith.constant 0 : index
    %c0_0 = arith.constant 0 : index
    %0 = vector.load %arg6[%c0, %c0_0] : memref<1x512xf32, #tpu.memory_space<vmem>>, vector<1x128xf32>
    %c0_1 = arith.constant 0 : index
    %c128 = arith.constant 128 : index
    %1 = vector.load %arg6[%c0_1, %c128] : memref<1x512xf32, #tpu.memory_space<vmem>>, vector<1x128xf32>
    %c0_2 = arith.constant 0 : index
    %c256 = arith.constant 256 : index
    %2 = vector.load %arg6[%c0_2, %c256] : memref<1x512xf32, #tpu.memory_space<vmem>>, vector<1x128xf32>
    %c0_3 = arith.constant 0 : index
    %c384 = arith.constant 384 : index
    %3 = vector.load %arg6[%c0_3, %c384] : memref<1x512xf32, #tpu.memory_space<vmem>>, vector<1x128xf32>
    %c0_4 = arith.constant 0 : index
    %c0_5 = arith.constant 0 : index
    %4 = vector.load %arg1[%c0_4, %c0_5] : memref<8x128xbf16, #tpu.memory_space<vmem>>, vector<8x128xbf16>
    %c0_6 = arith.constant 0 : index
    %c0_7 = arith.constant 0 : index
    %5 = vector.load %arg2[%c0_6, %c0_7] : memref<128x128xbf16, #tpu.memory_space<vmem>>, vector<128x128xbf16>
    %cst = arith.constant dense<0.000000e+00> : vector<8x128xf32>
    %6 = tpu.matmul %4, %5, %cst {dimension_numbers = #tpu.dot_dimension_numbers<[1], [0], [0], [1], [0, 0, 1, 1], [], []>} : vector<8x128xbf16>, vector<128x128xbf16>, vector<8x128xf32> -> vector<8x128xf32>
    %7 = vector.broadcast %0 : vector<1x128xf32> to vector<8x128xf32>
    %8 = arith.addf %6, %7 : vector<8x128xf32>
    %cst_8 = arith.constant 0.000000e+00 : f32
    %9 = vector.broadcast %cst_8 : f32 to vector<8x128xf32>
    %10 = arith.maximumf %8, %9 : vector<8x128xf32>
    %11 = arith.truncf %10 : vector<8x128xf32> to vector<8x128xbf16>
    %c0_9 = arith.constant 0 : index
    %c0_10 = arith.constant 0 : index
    %12 = vector.load %arg3[%c0_9, %c0_10] : memref<128x128xbf16, #tpu.memory_space<vmem>>, vector<128x128xbf16>
    %cst_11 = arith.constant dense<0.000000e+00> : vector<8x128xf32>
    %13 = tpu.matmul %11, %12, %cst_11 {dimension_numbers = #tpu.dot_dimension_numbers<[1], [0], [0], [1], [0, 0, 1, 1], [], []>} : vector<8x128xbf16>, vector<128x128xbf16>, vector<8x128xf32> -> vector<8x128xf32>
    %14 = vector.broadcast %1 : vector<1x128xf32> to vector<8x128xf32>
    %15 = arith.addf %13, %14 : vector<8x128xf32>
    %cst_12 = arith.constant 0.000000e+00 : f32
    %16 = vector.broadcast %cst_12 : f32 to vector<8x128xf32>
    %17 = arith.maximumf %15, %16 : vector<8x128xf32>
    %18 = arith.truncf %17 : vector<8x128xf32> to vector<8x128xbf16>
    %c0_13 = arith.constant 0 : index
    %c0_14 = arith.constant 0 : index
    %19 = vector.load %arg4[%c0_13, %c0_14] : memref<128x128xbf16, #tpu.memory_space<vmem>>, vector<128x128xbf16>
    %cst_15 = arith.constant dense<0.000000e+00> : vector<8x128xf32>
    %20 = tpu.matmul %18, %19, %cst_15 {dimension_numbers = #tpu.dot_dimension_numbers<[1], [0], [0], [1], [0, 0, 1, 1], [], []>} : vector<8x128xbf16>, vector<128x128xbf16>, vector<8x128xf32> -> vector<8x128xf32>
    %21 = vector.broadcast %2 : vector<1x128xf32> to vector<8x128xf32>
    %22 = arith.addf %20, %21 : vector<8x128xf32>
    %cst_16 = arith.constant 0.000000e+00 : f32
    %23 = vector.broadcast %cst_16 : f32 to vector<8x128xf32>
    %24 = arith.maximumf %22, %23 : vector<8x128xf32>
    %25 = arith.truncf %24 : vector<8x128xf32> to vector<8x128xbf16>
    %c0_17 = arith.constant 0 : index
    %c0_18 = arith.constant 0 : index
    %26 = vector.load %arg5[%c0_17, %c0_18] : memref<128x128xbf16, #tpu.memory_space<vmem>>, vector<128x128xbf16>
    %cst_19 = arith.constant dense<0.000000e+00> : vector<8x128xf32>
    %27 = tpu.matmul %25, %26, %cst_19 {dimension_numbers = #tpu.dot_dimension_numbers<[1], [0], [0], [1], [0, 0, 1, 1], [], []>} : vector<8x128xbf16>, vector<128x128xbf16>, vector<8x128xf32> -> vector<8x128xf32>
    %28 = vector.broadcast %3 : vector<1x128xf32> to vector<8x128xf32>
    %29 = arith.addf %27, %28 : vector<8x128xf32>
    %c0_20 = arith.constant 0 : index
    %c0_21 = arith.constant 0 : index
    %30 = vector.load %arg7[%c0_20, %c0_21] : memref<8x128xf32, #tpu.memory_space<vmem>>, vector<8x128xf32>
    tpu.vector_store %arg7[%c0_20, %c0_21], %29 {strides = array<i32>} : memref<8x128xf32, #tpu.memory_space<vmem>>, vector<8x128xf32>,
    return
  }
  func.func @transform_0(%arg0: i32) -> (i32, i32) {
    %c0_i32 = arith.constant 0 : i32
    %c0_i32_0 = arith.constant 0 : i32
    return %arg0, %c0_i32 : i32, i32
  }
  func.func @transform_1(%arg0: i32) -> (i32, i32) {
    %c0_i32 = arith.constant 0 : i32
    %c0_i32_0 = arith.constant 0 : i32
    %c0_i32_1 = arith.constant 0 : i32
    return %c0_i32, %c0_i32_0 : i32, i32
  }
  func.func @transform_2(%arg0: i32) -> (i32, i32) {
    %c0_i32 = arith.constant 0 : i32
    %c0_i32_0 = arith.constant 0 : i32
    %c0_i32_1 = arith.constant 0 : i32
    return %c0_i32, %c0_i32_0 : i32, i32
  }
  func.func @transform_3(%arg0: i32) -> (i32, i32) {
    %c0_i32 = arith.constant 0 : i32
    %c0_i32_0 = arith.constant 0 : i32
    %c0_i32_1 = arith.constant 0 : i32
    return %c0_i32, %c0_i32_0 : i32, i32
  }
  func.func @transform_4(%arg0: i32) -> (i32, i32) {
    %c0_i32 = arith.constant 0 : i32
    %c0_i32_0 = arith.constant 0 : i32
    %c0_i32_1 = arith.constant 0 : i32
    return %c0_i32, %c0_i32_0 : i32, i32
  }
  func.func @transform_5(%arg0: i32) -> (i32, i32) {
    %c0_i32 = arith.constant 0 : i32
    %c0_i32_0 = arith.constant 0 : i32
    %c0_i32_1 = arith.constant 0 : i32
    return %c0_i32, %c0_i32_0 : i32, i32
  }
  func.func @transform_6(%arg0: i32) -> (i32, i32) {
    %c0_i32 = arith.constant 0 : i32
    %c0_i32_0 = arith.constant 0 : i32
    return %arg0, %c0_i32 : i32, i32
  }
}

</mosaic_0001>

<llo_original>
// kernel: decoder3_forward.1
$region0: #{decoder3_forward.1}
  #allocation0 [shape = 'u32[]', space=smem, size = 0x4, offset = 0x4, fixed_abs, tag = 'smem constant byte address 0x4 - core index']
  #allocation1 [shape = 'u32[144,128]{1,0:T(1,128)}', space=vmem, size = 0x12000, scoped, tag = 'internal scratch']
  %s0 = inlined_call_operand.vmem [shape: bf16[8,128], index: 0, kind: input, shape index: {}]
  %s1 = inlined_call_operand.hbm [shape: bf16[128,128], index: 1, kind: input, shape index: {}]
  %s2 = inlined_call_operand.hbm [shape: bf16[128,128], index: 2, kind: input, shape index: {}]
  %s3 = inlined_call_operand.hbm [shape: bf16[128,128], index: 3, kind: input, shape index: {}]
  %s4 = inlined_call_operand.hbm [shape: bf16[128,128], index: 4, kind: input, shape index: {}]
  %s5 = inlined_call_operand.vmem [shape: f32[1,512], index: 5, kind: input, shape index: {}]
  %s6 = inlined_call_operand.hbm [shape: f32[8,128], index: 6, kind: output, shape index: {}]
  %s7 = sld [smem:[#allocation0]]
  $region50: #{decoder3_forward.1} parent=0
    _
  %s9 = ssub.s32 1, %s7
  %s10 = scalar_select 0, %s9, %s7
  $region1: #{decoder3_forward.1} parent=0
    #allocation2 [shape = 'u8[32768]{0}', space=vmem, size = 0x8000, scoped, tag = 'input window, operand 1, single buffered']
    #allocation3 [shape = 's32[1]{0}', space=sflag, size = 0x4, scoped, tag = 'scoped memory for decoder3_forward.1']
    #allocation4 [shape = 's32[1]{0}', space=sflag, size = 0x4, scoped, tag = 'scoped memory for decoder3_forward.1']
    #allocation5 [shape = 'u8[32768]{0}', space=vmem, size = 0x8000, scoped, tag = 'input window, operand 2, single buffered']
    #allocation6 [shape = 's32[1]{0}', space=sflag, size = 0x4, scoped, tag = 'scoped memory for decoder3_forward.1']
    #allocation7 [shape = 'u8[32768]{0}', space=vmem, size = 0x8000, scoped, tag = 'input window, operand 3, single buffered']
    #allocation8 [shape = 'u8[32768]{0}', space=vmem, size = 0x8000, scoped, tag = 'input window, operand 4, single buffered']
    #allocation9 [shape = 's32[1]{0}', space=sflag, size = 0x4, scoped, tag = 'scoped memory for decoder3_forward.1']
    #allocation10 [shape = 'u8[4096]{0}', space=vmem, size = 0x1000, scoped, tag = 'output window, operand 0, single buffered']
    %11 = vsyncpa [#allocation3], 0
    %12 = vsyncpa [#allocation6], 0
    %13 = vsyncpa [#allocation9], 0
    %14 = vsyncpa [#allocation4], 0
    // Predicated region
    $region2: #{decoder3_forward.1} parent=1 // pred_check
      _
    $region3: #{decoder3_forward.1} parent=1 // pred_check_branch
      %16 = sbr.rel (0) target = $region5
    $region4: #{decoder3_forward.1} parent=1 // pred_region
      _
    $region5: #{decoder3_forward.1} parent=1 // pred_fallthru
      _
    // Predicated region
    $region6: #{decoder3_forward.1} parent=1 // pred_check
      _
    $region7: #{decoder3_forward.1} parent=1 // pred_check_branch
      %18 = sbr.rel (0) target = $region9
    $region8: #{decoder3_forward.1} parent=1 // pred_region
      %s20 = ssub.s32 1024, 1024
      %21 = vsyncadd [#allocation3], %s20
      %s22 = sshll.u32 [#allocation2], 4
      %s23 = int_to_ptr.vmem [resolvable:$true] %s22
      %28 = dma.hbm_to_vmem [thread:$0]  %s1, 1024, %s23, [#allocation3], 64, 64, 4
    $region9: #{decoder3_forward.1} parent=1 // pred_fallthru
      _
    // Predicated region
    $region10: #{decoder3_forward.1} parent=1 // pred_check
      _
    $region11: #{decoder3_forward.1} parent=1 // pred_check_branch
      %30 = sbr.rel (0) target = $region13
    $region12: #{decoder3_forward.1} parent=1 // pred_region
      %s32 = ssub.s32 1024, 1024
      %33 = vsyncadd [#allocation6], %s32
      %s34 = sshll.u32 [#allocation5], 4
      %s35 = int_to_ptr.vmem [resolvable:$true] %s34
      %40 = dma.hbm_to_vmem [thread:$0]  %s2, 1024, %s35, [#allocation6], 64, 64, 4
    $region13: #{decoder3_forward.1} parent=1 // pred_fallthru
      _
    // Predicated region
    $region14: #{decoder3_forward.1} parent=1 // pred_check
      _
    $region15: #{decoder3_forward.1} parent=1 // pred_check_branch
      %42 = sbr.rel (0) target = $region17
    $region16: #{decoder3_forward.1} parent=1 // pred_region
      %s44 = ssub.s32 1024, 1024
      %45 = vsyncadd [#allocation6], %s44
      %s46 = sshll.u32 [#allocation7], 4
      %s47 = int_to_ptr.vmem [resolvable:$true] %s46
      %52 = dma.hbm_to_vmem [thread:$0]  %s3, 1024, %s47, [#allocation6], 64, 64, 4
    $region17: #{decoder3_forward.1} parent=1 // pred_fallthru
      _
    // Predicated region
    $region18: #{decoder3_forward.1} parent=1 // pred_check
      _
    $region19: #{decoder3_forward.1} parent=1 // pred_check_branch
      %54 = sbr.rel (0) target = $region21
    $region20: #{decoder3_forward.1} parent=1 // pred_region
      %s56 = ssub.s32 1024, 1024
      %57 = vsyncadd [#allocation9], %s56
      %s58 = sshll.u32 [#allocation8], 4
      %s59 = int_to_ptr.vmem [resolvable:$true] %s58
      %64 = dma.hbm_to_vmem [thread:$0]  %s4, 1024, %s59, [#allocation9], 64, 64, 4
    $region21: #{decoder3_forward.1} parent=1 // pred_fallthru
      _
    // Predicated region
    $region22: #{decoder3_forward.1} parent=1 // pred_check
      _
    $region23: #{decoder3_forward.1} parent=1 // pred_check_branch
      %66 = sbr.rel (0) target = $region25
    $region24: #{decoder3_forward.1} parent=1 // pred_region
      _
    $region25: #{decoder3_forward.1} parent=1 // pred_fallthru
      _
    // Predicated region
    $region26: #{decoder3_forward.1} parent=1 // pred_check
      _
    $region27: #{decoder3_forward.1} parent=1 // pred_check_branch
      %68 = sbr.rel (0) target = $region29
    $region28: #{decoder3_forward.1} parent=1 // pred_region
      %69 = dma.done [#allocation3], 1024
    $region29: #{decoder3_forward.1} parent=1 // pred_fallthru
      _
    // Predicated region
    $region30: #{decoder3_forward.1} parent=1 // pred_check
      _
    $region31: #{decoder3_forward.1} parent=1 // pred_check_branch
      %71 = sbr.rel (0) target = $region33
    $region32: #{decoder3_forward.1} parent=1 // pred_region
      %72 = dma.done [#allocation6], 1024
    $region33: #{decoder3_forward.1} parent=1 // pred_fallthru
      _
    // Predicated region
    $region34: #{decoder3_forward.1} parent=1 // pred_check
      _
    $region35: #{decoder3_forward.1} parent=1 // pred_check_branch
      %74 = sbr.rel (0) target = $region37
    $region36: #{decoder3_forward.1} parent=1 // pred_region
      %75 = dma.done [#allocation6], 1024
    $region37: #{decoder3_forward.1} parent=1 // pred_fallthru
      _
    // Predicated region
    $region38: #{decoder3_forward.1} parent=1 // pred_check
      _
    $region39: #{decoder3_forward.1} parent=1 // pred_check_branch
      %77 = sbr.rel (0) target = $region41
    $region40: #{decoder3_forward.1} parent=1 // pred_region
      %78 = dma.done [#allocation9], 1024
    $region41: #{decoder3_forward.1} parent=1 // pred_fallthru
      _
    %v80 = vld [vmem:[%s5] sm:$0x1]
    %v81 = vld [vmem:[%s5 + $0x1] sm:$0x1]
    %v82 = vld [vmem:[%s5 + $0x2] sm:$0x1]
    %v83 = vld [vmem:[%s5 + $0x3] sm:$0x1]
    %v84 = vld [vmem:[%s0] sm:$0xf]
    %v85 = vld [vmem:[#allocation2] sm:$0xf]
    %v86 = vld [vmem:[#allocation2 + $0x4] sm:$0xf]
    %v87 = vld [vmem:[#allocation2 + $0x8] sm:$0xf]
    %v88 = vld [vmem:[#allocation2 + $0xc] sm:$0xf]
    %v89 = vld [vmem:[#allocation2 + $0x10] sm:$0xf]
    %v90 = vld [vmem:[#allocation2 + $0x14] sm:$0xf]
    %v91 = vld [vmem:[#allocation2 + $0x18] sm:$0xf]
    %v92 = vld [vmem:[#allocation2 + $0x1c] sm:$0xf]
    %v93 = vld [vmem:[#allocation2 + $0x20] sm:$0xf]
    %v94 = vld [vmem:[#allocation2 + $0x24] sm:$0xf]
    %v95 = vld [vmem:[#allocation2 + $0x28] sm:$0xf]
    %v96 = vld [vmem:[#allocation2 + $0x2c] sm:$0xf]
    %v97 = vld [vmem:[#allocation2 + $0x30] sm:$0xf]
    %v98 = vld [vmem:[#allocation2 + $0x34] sm:$0xf]
    %v99 = vld [vmem:[#allocation2 + $0x38] sm:$0xf]
    %v100 = vld [vmem:[#allocation2 + $0x3c] sm:$0xf]
    %v102 = vlaneseq
    %v103 = vshrl.u32 %v102, 7
    %v104 = vsub.s32 0, %v103
    %v105 = vrot.slane %v80, %v104
    %v123 = vunpack.c.l.b16 %v85
    %v124 = vunpack.c.l.b16 %v86
    %v125 = vunpack.c.l.b16 %v87
    %v126 = vunpack.c.l.b16 %v88
    %v127 = vunpack.c.l.b16 %v89
    %v128 = vunpack.c.l.b16 %v90
    %v129 = vunpack.c.l.b16 %v91
    %v130 = vunpack.c.l.b16 %v92
    %v131 = vunpack.c.l.b16 %v93
    %v132 = vunpack.c.l.b16 %v94
    %v133 = vunpack.c.l.b16 %v95
    %v134 = vunpack.c.l.b16 %v96
    %v135 = vunpack.c.l.b16 %v97
    %v136 = vunpack.c.l.b16 %v98
    %v137 = vunpack.c.l.b16 %v99
    %v138 = vunpack.c.l.b16 %v100
    %v139 = vpack.c.b16 %v124, %v123
    %v140 = vpack.c.b16 %v126, %v125
    %v141 = vpack.c.b16 %v128, %v127
    %v142 = vpack.c.b16 %v130, %v129
    %v143 = vpack.c.b16 %v132, %v131
    %v144 = vpack.c.b16 %v134, %v133
    %v145 = vpack.c.b16 %v136, %v135
    %v146 = vpack.c.b16 %v138, %v137
    %155 = vmatprep.subr.bf16.mxu0 0
    %156 = vmatpush1.bf16.msra.mxu0 %v139
    %157 = vmatprep.subr.bf16.mxu0 0
    %158 = vmatpush1.bf16.msra.mxu0 %v140
    %159 = vmatprep.subr.bf16.mxu0 0
    %160 = vmatpush1.bf16.msra.mxu0 %v141
    %161 = vmatprep.subr.bf16.mxu0 0
    %162 = vmatpush1.bf16.msra.mxu0 %v142
    %163 = vmatprep.subr.bf16.mxu0 0
    %164 = vmatpush1.bf16.msra.mxu0 %v143
    %165 = vmatprep.subr.bf16.mxu0 0
    %166 = vmatpush1.bf16.msra.mxu0 %v144
    %167 = vmatprep.subr.bf16.mxu0 0
    %168 = vmatpush1.bf16.msra.mxu0 %v145
    %169 = vmatprep.subr.bf16.mxu0 0
    %170 = vmatpush1.bf16.msra.mxu0 %v146
    %171 = vmatprep.subr.bf16.mxu0 0
    %172 = vmatpush1.bf16.msra.mxu0 0
    %173 = vmatprep.subr.bf16.mxu0 0
    %174 = vmatpush1.bf16.msra.mxu0 0
    %175 = vmatprep.subr.bf16.mxu0 0
    %176 = vmatpush1.bf16.msra.mxu0 0
    %177 = vmatprep.subr.bf16.mxu0 0
    %178 = vmatpush1.bf16.msra.mxu0 0
    %179 = vmatprep.subr.bf16.mxu0 0
    %180 = vmatpush1.bf16.msra.mxu0 0
    %181 = vmatprep.subr.bf16.mxu0 0
    %182 = vmatpush1.bf16.msra.mxu0 0
    %183 = vmatprep.subr.bf16.mxu0 0
    %184 = vmatpush1.bf16.msra.mxu0 0
    %185 = vmatprep.subr.bf16.mxu0 0
    %186 = vmatpush1.bf16.msra.mxu0 0
    %187 = vmatprep.mubr.bf16.mxu0 0
    %188 = vmatmul.mubr.bf16.gmra.mrb[0].mxu0 %v84
    %v189 = vpop.f32.mrb[0].mxu0
    %v190 = vadd.f32 %v105, %v189
    %v191 = vpop.f32.mrb[0].mxu0
    %v192 = vpop.f32.mrb[0].mxu0
    %v193 = vpop.f32.mrb[0].mxu0
    %194 = vdwg.mxu0
    %v195 = vmax.f32 %v190, 0.0
    %v196 = vpack.c.bf16 %v195, %v195
    %v197 = vld [vmem:[#allocation5] sm:$0xf]
    %v198 = vld [vmem:[#allocation5 + $0x4] sm:$0xf]
    %v199 = vld [vmem:[#allocation5 + $0x8] sm:$0xf]
    %v200 = vld [vmem:[#allocation5 + $0xc] sm:$0xf]
    %v201 = vld [vmem:[#allocation5 + $0x10] sm:$0xf]
    %v202 = vld [vmem:[#allocation5 + $0x14] sm:$0xf]
    %v203 = vld [vmem:[#allocation5 + $0x18] sm:$0xf]
    %v204 = vld [vmem:[#allocation5 + $0x1c] sm:$0xf]
    %v205 = vld [vmem:[#allocation5 + $0x20] sm:$0xf]
    %v206 = vld [vmem:[#allocation5 + $0x24] sm:$0xf]
    %v207 = vld [vmem:[#allocation5 + $0x28] sm:$0xf]
    %v208 = vld [vmem:[#allocation5 + $0x2c] sm:$0xf]
    %v209 = vld [vmem:[#allocation5 + $0x30] sm:$0xf]
    %v210 = vld [vmem:[#allocation5 + $0x34] sm:$0xf]
    %v211 = vld [vmem:[#allocation5 + $0x38] sm:$0xf]
    %v212 = vld [vmem:[#allocation5 + $0x3c] sm:$0xf]
    %v214 = vlaneseq
    %v215 = vshrl.u32 %v214, 7
    %v216 = vsub.s32 0, %v215
    %v217 = vrot.slane %v81, %v216
    %v235 = vunpack.c.l.b16 %v197
    %v236 = vunpack.c.l.b16 %v198
    %v237 = vunpack.c.l.b16 %v199
    %v238 = vunpack.c.l.b16 %v200
    %v239 = vunpack.c.l.b16 %v201
    %v240 = vunpack.c.l.b16 %v202
    %v241 = vunpack.c.l.b16 %v203
    %v242 = vunpack.c.l.b16 %v204
    %v243 = vunpack.c.l.b16 %v205
    %v244 = vunpack.c.l.b16 %v206
    %v245 = vunpack.c.l.b16 %v207
    %v246 = vunpack.c.l.b16 %v208
    %v247 = vunpack.c.l.b16 %v209
    %v248 = vunpack.c.l.b16 %v210
    %v249 = vunpack.c.l.b16 %v211
    %v250 = vunpack.c.l.b16 %v212
    %v251 = vpack.c.b16 %v236, %v235
    %v252 = vpack.c.b16 %v238, %v237
    %v253 = vpack.c.b16 %v240, %v239
    %v254 = vpack.c.b16 %v242, %v241
    %v255 = vpack.c.b16 %v244, %v243
    %v256 = vpack.c.b16 %v246, %v245
    %v257 = vpack.c.b16 %v248, %v247
    %v258 = vpack.c.b16 %v250, %v249
    %267 = vmatprep.subr.bf16.mxu0 0
    %268 = vmatpush1.bf16.msra.mxu0 %v251
    %269 = vmatprep.subr.bf16.mxu0 0
    %270 = vmatpush1.bf16.msra.mxu0 %v252
    %271 = vmatprep.subr.bf16.mxu0 0
    %272 = vmatpush1.bf16.msra.mxu0 %v253
    %273 = vmatprep.subr.bf16.mxu0 0
    %274 = vmatpush1.bf16.msra.mxu0 %v254
    %275 = vmatprep.subr.bf16.mxu0 0
    %276 = vmatpush1.bf16.msra.mxu0 %v255
    %277 = vmatprep.subr.bf16.mxu0 0
    %278 = vmatpush1.bf16.msra.mxu0 %v256
    %279 = vmatprep.subr.bf16.mxu0 0
    %280 = vmatpush1.bf16.msra.mxu0 %v257
    %281 = vmatprep.subr.bf16.mxu0 0
    %282 = vmatpush1.bf16.msra.mxu0 %v258
    %283 = vmatprep.subr.bf16.mxu0 0
    %284 = vmatpush1.bf16.msra.mxu0 0
    %285 = vmatprep.subr.bf16.mxu0 0
    %286 = vmatpush1.bf16.msra.mxu0 0
    %287 = vmatprep.subr.bf16.mxu0 0
    %288 = vmatpush1.bf16.msra.mxu0 0
    %289 = vmatprep.subr.bf16.mxu0 0
    %290 = vmatpush1.bf16.msra.mxu0 0
    %291 = vmatprep.subr.bf16.mxu0 0
    %292 = vmatpush1.bf16.msra.mxu0 0
    %293 = vmatprep.subr.bf16.mxu0 0
    %294 = vmatpush1.bf16.msra.mxu0 0
    %295 = vmatprep.subr.bf16.mxu0 0
    %296 = vmatpush1.bf16.msra.mxu0 0
    %297 = vmatprep.subr.bf16.mxu0 0
    %298 = vmatpush1.bf16.msra.mxu0 0
    %299 = vmatprep.mubr.bf16.mxu0 0
    %300 = vmatmul.mubr.bf16.gmra.mrb[0].mxu0 %v196
    %v301 = vpop.f32.mrb[0].mxu0
    %v302 = vadd.f32 %v217, %v301
    %v303 = vpop.f32.mrb[0].mxu0
    %v304 = vpop.f32.mrb[0].mxu0
    %v305 = vpop.f32.mrb[0].mxu0
    %306 = vdwg.mxu0
    %v307 = vmax.f32 %v302, 0.0
    %v308 = vpack.c.bf16 %v307, %v307
    %v309 = vld [vmem:[#allocation7] sm:$0xf]
    %v310 = vld [vmem:[#allocation7 + $0x4] sm:$0xf]
    %v311 = vld [vmem:[#allocation7 + $0x8] sm:$0xf]
    %v312 = vld [vmem:[#allocation7 + $0xc] sm:$0xf]
    %v313 = vld [vmem:[#allocation7 + $0x10] sm:$0xf]
    %v314 = vld [vmem:[#allocation7 + $0x14] sm:$0xf]
    %v315 = vld [vmem:[#allocation7 + $0x18] sm:$0xf]
    %v316 = vld [vmem:[#allocation7 + $0x1c] sm:$0xf]
    %v317 = vld [vmem:[#allocation7 + $0x20] sm:$0xf]
    %v318 = vld [vmem:[#allocation7 + $0x24] sm:$0xf]
    %v319 = vld [vmem:[#allocation7 + $0x28] sm:$0xf]
    %v320 = vld [vmem:[#allocation7 + $0x2c] sm:$0xf]
    %v321 = vld [vmem:[#allocation7 + $0x30] sm:$0xf]
    %v322 = vld [vmem:[#allocation7 + $0x34] sm:$0xf]
    %v323 = vld [vmem:[#allocation7 + $0x38] sm:$0xf]
    %v324 = vld [vmem:[#allocation7 + $0x3c] sm:$0xf]
    %v326 = vlaneseq
    %v327 = vshrl.u32 %v326, 7
    %v328 = vsub.s32 0, %v327
    %v329 = vrot.slane %v82, %v328
    %v347 = vunpack.c.l.b16 %v309
    %v348 = vunpack.c.l.b16 %v310
    %v349 = vunpack.c.l.b16 %v311
    %v350 = vunpack.c.l.b16 %v312
    %v351 = vunpack.c.l.b16 %v313
    %v352 = vunpack.c.l.b16 %v314
    %v353 = vunpack.c.l.b16 %v315
    %v354 = vunpack.c.l.b16 %v316
    %v355 = vunpack.c.l.b16 %v317
    %v356 = vunpack.c.l.b16 %v318
    %v357 = vunpack.c.l.b16 %v319
    %v358 = vunpack.c.l.b16 %v320
    %v359 = vunpack.c.l.b16 %v321
    %v360 = vunpack.c.l.b16 %v322
    %v361 = vunpack.c.l.b16 %v323
    %v362 = vunpack.c.l.b16 %v324
    %v363 = vpack.c.b16 %v348, %v347
    %v364 = vpack.c.b16 %v350, %v349
    %v365 = vpack.c.b16 %v352, %v351
    %v366 = vpack.c.b16 %v354, %v353
    %v367 = vpack.c.b16 %v356, %v355
    %v368 = vpack.c.b16 %v358, %v357
    %v369 = vpack.c.b16 %v360, %v359
    %v370 = vpack.c.b16 %v362, %v361
    %379 = vmatprep.subr.bf16.mxu0 0
    %380 = vmatpush1.bf16.msra.mxu0 %v363
    %381 = vmatprep.subr.bf16.mxu0 0
    %382 = vmatpush1.bf16.msra.mxu0 %v364
    %383 = vmatprep.subr.bf16.mxu0 0
    %384 = vmatpush1.bf16.msra.mxu0 %v365
    %385 = vmatprep.subr.bf16.mxu0 0
    %386 = vmatpush1.bf16.msra.mxu0 %v366
    %387 = vmatprep.subr.bf16.mxu0 0
    %388 = vmatpush1.bf16.msra.mxu0 %v367
    %389 = vmatprep.subr.bf16.mxu0 0
    %390 = vmatpush1.bf16.msra.mxu0 %v368
    %391 = vmatprep.subr.bf16.mxu0 0
    %392 = vmatpush1.bf16.msra.mxu0 %v369
    %393 = vmatprep.subr.bf16.mxu0 0
    %394 = vmatpush1.bf16.msra.mxu0 %v370
    %395 = vmatprep.subr.bf16.mxu0 0
    %396 = vmatpush1.bf16.msra.mxu0 0
    %397 = vmatprep.subr.bf16.mxu0 0
    %398 = vmatpush1.bf16.msra.mxu0 0
    %399 = vmatprep.subr.bf16.mxu0 0
    %400 = vmatpush1.bf16.msra.mxu0 0
    %401 = vmatprep.subr.bf16.mxu0 0
    %402 = vmatpush1.bf16.msra.mxu0 0
    %403 = vmatprep.subr.bf16.mxu0 0
    %404 = vmatpush1.bf16.msra.mxu0 0
    %405 = vmatprep.subr.bf16.mxu0 0
    %406 = vmatpush1.bf16.msra.mxu0 0
    %407 = vmatprep.subr.bf16.mxu0 0
    %408 = vmatpush1.bf16.msra.mxu0 0
    %409 = vmatprep.subr.bf16.mxu0 0
    %410 = vmatpush1.bf16.msra.mxu0 0
    %411 = vmatprep.mubr.bf16.mxu0 0
    %412 = vmatmul.mubr.bf16.gmra.mrb[0].mxu0 %v308
    %v413 = vpop.f32.mrb[0].mxu0
    %v414 = vadd.f32 %v329, %v413
    %v415 = vpop.f32.mrb[0].mxu0
    %v416 = vpop.f32.mrb[0].mxu0
    %v417 = vpop.f32.mrb[0].mxu0
    %418 = vdwg.mxu0
    %v419 = vmax.f32 %v414, 0.0
    %v420 = vpack.c.bf16 %v419, %v419
    %v421 = vld [vmem:[#allocation8] sm:$0xf]
    %v422 = vld [vmem:[#allocation8 + $0x4] sm:$0xf]
    %v423 = vld [vmem:[#allocation8 + $0x8] sm:$0xf]
    %v424 = vld [vmem:[#allocation8 + $0xc] sm:$0xf]
    %v425 = vld [vmem:[#allocation8 + $0x10] sm:$0xf]
    %v426 = vld [vmem:[#allocation8 + $0x14] sm:$0xf]
    %v427 = vld [vmem:[#allocation8 + $0x18] sm:$0xf]
    %v428 = vld [vmem:[#allocation8 + $0x1c] sm:$0xf]
    %v429 = vld [vmem:[#allocation8 + $0x20] sm:$0xf]
    %v430 = vld [vmem:[#allocation8 + $0x24] sm:$0xf]
    %v431 = vld [vmem:[#allocation8 + $0x28] sm:$0xf]
    %v432 = vld [vmem:[#allocation8 + $0x2c] sm:$0xf]
    %v433 = vld [vmem:[#allocation8 + $0x30] sm:$0xf]
    %v434 = vld [vmem:[#allocation8 + $0x34] sm:$0xf]
    %v435 = vld [vmem:[#allocation8 + $0x38] sm:$0xf]
    %v436 = vld [vmem:[#allocation8 + $0x3c] sm:$0xf]
    %v438 = vlaneseq
    %v439 = vshrl.u32 %v438, 7
    %v440 = vsub.s32 0, %v439
    %v441 = vrot.slane %v83, %v440
    %v459 = vunpack.c.l.b16 %v421
    %v460 = vunpack.c.l.b16 %v422
    %v461 = vunpack.c.l.b16 %v423
    %v462 = vunpack.c.l.b16 %v424
    %v463 = vunpack.c.l.b16 %v425
    %v464 = vunpack.c.l.b16 %v426
    %v465 = vunpack.c.l.b16 %v427
    %v466 = vunpack.c.l.b16 %v428
    %v467 = vunpack.c.l.b16 %v429
    %v468 = vunpack.c.l.b16 %v430
    %v469 = vunpack.c.l.b16 %v431
    %v470 = vunpack.c.l.b16 %v432
    %v471 = vunpack.c.l.b16 %v433
    %v472 = vunpack.c.l.b16 %v434
    %v473 = vunpack.c.l.b16 %v435
    %v474 = vunpack.c.l.b16 %v436
    %v475 = vpack.c.b16 %v460, %v459
    %v476 = vpack.c.b16 %v462, %v461
    %v477 = vpack.c.b16 %v464, %v463
    %v478 = vpack.c.b16 %v466, %v465
    %v479 = vpack.c.b16 %v468, %v467
    %v480 = vpack.c.b16 %v470, %v469
    %v481 = vpack.c.b16 %v472, %v471
    %v482 = vpack.c.b16 %v474, %v473
    %491 = vmatprep.subr.bf16.mxu0 0
    %492 = vmatpush1.bf16.msra.mxu0 %v475
    %493 = vmatprep.subr.bf16.mxu0 0
    %494 = vmatpush1.bf16.msra.mxu0 %v476
    %495 = vmatprep.subr.bf16.mxu0 0
    %496 = vmatpush1.bf16.msra.mxu0 %v477
    %497 = vmatprep.subr.bf16.mxu0 0
    %498 = vmatpush1.bf16.msra.mxu0 %v478
    %499 = vmatprep.subr.bf16.mxu0 0
    %500 = vmatpush1.bf16.msra.mxu0 %v479
    %501 = vmatprep.subr.bf16.mxu0 0
    %502 = vmatpush1.bf16.msra.mxu0 %v480
    %503 = vmatprep.subr.bf16.mxu0 0
    %504 = vmatpush1.bf16.msra.mxu0 %v481
    %505 = vmatprep.subr.bf16.mxu0 0
    %506 = vmatpush1.bf16.msra.mxu0 %v482
    %507 = vmatprep.subr.bf16.mxu0 0
    %508 = vmatpush1.bf16.msra.mxu0 0
    %509 = vmatprep.subr.bf16.mxu0 0
    %510 = vmatpush1.bf16.msra.mxu0 0
    %511 = vmatprep.subr.bf16.mxu0 0
    %512 = vmatpush1.bf16.msra.mxu0 0
    %513 = vmatprep.subr.bf16.mxu0 0
    %514 = vmatpush1.bf16.msra.mxu0 0
    %515 = vmatprep.subr.bf16.mxu0 0
    %516 = vmatpush1.bf16.msra.mxu0 0
    %517 = vmatprep.subr.bf16.mxu0 0
    %518 = vmatpush1.bf16.msra.mxu0 0
    %519 = vmatprep.subr.bf16.mxu0 0
    %520 = vmatpush1.bf16.msra.mxu0 0
    %521 = vmatprep.subr.bf16.mxu0 0
    %522 = vmatpush1.bf16.msra.mxu0 0
    %523 = vmatprep.mubr.bf16.mxu0 0
    %524 = vmatmul.mubr.bf16.gmra.mrb[0].mxu0 %v420
    %v525 = vpop.f32.mrb[0].mxu0
    %v526 = vadd.f32 %v441, %v525
    %v527 = vpop.f32.mrb[0].mxu0
    %v528 = vpop.f32.mrb[0].mxu0
    %v529 = vpop.f32.mrb[0].mxu0
    %530 = vdwg.mxu0
    %531 = vst [vmem:[#allocation10] sm:$0xff] %v526
    // Predicated region
    $region42: #{decoder3_forward.1} parent=1 // pred_check
      _
    $region43: #{decoder3_forward.1} parent=1 // pred_check_branch
      %533 = sbr.rel (0) target = $region45
    $region44: #{decoder3_forward.1} parent=1 // pred_region
      %s535 = ssub.s32 128, 128
      %536 = vsyncadd [#allocation4], %s535
      %s538 = sshll.u32 [#allocation10], 4
      %s539 = int_to_ptr.vmem [resolvable:$true] %s538
      %541 = dma.vmem_to_hbm [thread:$0]  %s539, 128, %s6, [#allocation4]
    $region45: #{decoder3_forward.1} parent=1 // pred_fallthru
      _
    // Predicated region
    $region46: #{decoder3_forward.1} parent=1 // pred_check
      _
    $region47: #{decoder3_forward.1} parent=1 // pred_check_branch
      %543 = sbr.rel (0) target = $region49
    $region48: #{decoder3_forward.1} parent=1 // pred_region
      %544 = dma.done [#allocation4], 128
    $region49: #{decoder3_forward.1} parent=1 // pred_fallthru
      _
    %545 = vsyncpa [#allocation3], 1
    %546 = vsyncpa [#allocation6], 1
    %547 = vsyncpa [#allocation9], 1
    %548 = vsyncpa [#allocation4], 1

</llo_original>
